<compile_context>
chip_gen: v7x
topology: tpu7x:2x2x1
jax: 0.10.0
libtpu: 0.0.40
codegen_flags: <defaults>
</compile_context>

<pallas_src>
import math
import numpy as np
import jax
import jax.numpy as jnp
from jax.experimental import pallas as pl
from jax.experimental.pallas import tpu as pltpu


def _make_bilinear_attn_kernel(training: bool, identity: bool):
    """Builds the fused kernel; `training` / `identity` are static Python flags."""

    def _scores_to_out(x, mask, wy, out_ref):
        # x: (TB, L, H1) f32, wy: (TB, H1) f32, mask: (TB, L) int32 (1 = masked)
        scores = jnp.sum(x * wy[:, None, :], axis=-1)          # (TB, L)  VPU*+XLU sum
        scores = jnp.where(mask != 0, -jnp.inf, scores)        # masked_fill(-inf)
        m = jnp.max(scores, axis=-1, keepdims=True)            # stable softmax
        z = scores - m
        e = jnp.exp(z)
        denom = jnp.sum(e, axis=-1, keepdims=True)
        if training:
            out_ref[...] = (z - jnp.log(denom)).astype(out_ref.dtype)   # log_softmax
        else:
            out_ref[...] = (e / denom).astype(out_ref.dtype)            # softmax

    if identity:
        def kernel(x_ref, y_ref, mask_ref, out_ref):
            _scores_to_out(x_ref[...].astype(jnp.float32),
                           mask_ref[...],
                           y_ref[...].astype(jnp.float32),
                           out_ref)
    else:
        def kernel(x_ref, y_ref, w_ref, b_ref, mask_ref, out_ref):
            # Wy = y @ W.T + b  -> (TB, H1); contract the y_size axes on the MXU.
            wy = jax.lax.dot_general(
                y_ref[...], w_ref[...],
                dimension_numbers=(((1,), (1,)), ((), ())),
                preferred_element_type=jnp.float32) + b_ref[...]
            _scores_to_out(x_ref[...].astype(jnp.float32),
                           mask_ref[...], wy, out_ref)
    return kernel


def bilinear_seq_attn(x, y, x_mask, w=None, b=None, *, training=True):
    """x: (B, L, H1), y: (B, H2), x_mask: (B, L) bool/int (True = padded).
    Returns (B, L) attention weights (log-probs if training, probs otherwise)."""
    B, L, H1 = x.shape
    H2 = y.shape[1]
    identity = w is None
    if identity:
        assert H2 == H1, "identity=True requires y_size == x_size"

    mask_i32 = x_mask.astype(jnp.int32)

    # Batch tiling: large tiles to amortize per-grid-step overhead; pad only if
    # the batch exceeds one tile.
    MAX_TB = 256
    if B <= MAX_TB:
        TB, Bp = B, B
    else:
        TB = MAX_TB
        Bp = pl.cdiv(B, TB) * TB
    if Bp != B:
        pad = Bp - B
        x = jnp.pad(x, ((0, pad), (0, 0), (0, 0)))
        y = jnp.pad(y, ((0, pad), (0, 0)))
        mask_i32 = jnp.pad(mask_i32, ((0, pad), (0, 0)))  # padded rows: unmasked (finite)

    kernel = _make_bilinear_attn_kernel(training, identity)

    in_specs = [
        pl.BlockSpec((TB, L, H1), lambda i: (i, 0, 0)),      # x  (tiled over batch)
        pl.BlockSpec((TB, H2),    lambda i: (i, 0)),         # y
    ]
    args = [x, y]
    if not identity:
        in_specs += [
            pl.BlockSpec((H1, H2), lambda i: (0, 0)),        # W  (VMEM-resident)
            pl.BlockSpec((1, H1),  lambda i: (0, 0)),        # b  (VMEM-resident)
        ]
        args += [w, b.reshape(1, H1)]
    in_specs.append(pl.BlockSpec((TB, L), lambda i: (i, 0)))  # mask
    args.append(mask_i32)

    # Advisory cost estimate so XLA schedules neighbors sensibly.
    flops = 2 * Bp * H2 * H1 + 2 * Bp * L * H1 + 6 * Bp * L
    bytes_accessed = 4 * (x.size + y.size + mask_i32.size + Bp * L
                          + (0 if identity else (w.size + b.size)))
    cost = pl.CostEstimate(flops=flops,
                           transcendentals=Bp * L + Bp,
                           bytes_accessed=bytes_accessed)

    out = pl.pallas_call(
        kernel,
        out_shape=jax.ShapeDtypeStruct((Bp, L), jnp.float32),
        grid_spec=pltpu.PrefetchScalarGridSpec(
            num_scalar_prefetch=0,
            grid=(Bp // TB,),
            in_specs=in_specs,
            out_specs=pl.BlockSpec((TB, L), lambda i: (i, 0)),
        ),
        compiler_params=pltpu.CompilerParams(
            dimension_semantics=("parallel",)),   # batch blocks are independent
        cost_estimate=cost,
    )(*args)

    if Bp != B:
        out = out[:B]
    return out


class BilinearSeqAttn:
    """JAX/Pallas port of the PyTorch BilinearSeqAttn module (forward only)."""

    def __init__(self, x_size, y_size, identity=False, *, key=None):
        self.identity = identity
        self.training = True  # mirrors nn.Module default
        if not identity:
            k_w, k_b = jax.random.split(key)
            bound = 1.0 / math.sqrt(y_size)   # nn.Linear default init
            self.W = jax.random.uniform(k_w, (x_size, y_size),
                                        minval=-bound, maxval=bound,
                                        dtype=jnp.float32)
            self.b = jax.random.uniform(k_b, (x_size,),
                                        minval=-bound, maxval=bound,
                                        dtype=jnp.float32)
        else:
            self.W = None
            self.b = None

    def __call__(self, x, y, x_mask):
        return bilinear_seq_attn(x, y, x_mask, self.W, self.b,
                                 training=self.training)


if __name__ == "__main__":
    key = jax.random.PRNGKey(0)
    k_x, k_y, k_w = jax.random.split(key, 3)

    batch, seq_len, x_size, y_size = 2, 8, 32, 16
    attn = BilinearSeqAttn(x_size, y_size, identity=False, key=k_w)

    x = jax.random.normal(k_x, (batch, seq_len, x_size), dtype=jnp.float32)
    y = jax.random.normal(k_y, (batch, y_size), dtype=jnp.float32)
    # x_mask: True = padded position (row 0 full length, row 1 has 3 padded).
    lengths = jnp.array([seq_len, seq_len - 3])
    x_mask = jnp.arange(seq_len)[None, :] >= lengths[:, None]

    def ref_forward(training):
        Wy = y @ attn.W.T + attn.b
        scores = jnp.einsum('blh,bh->bl', x, Wy)
        scores = jnp.where(x_mask, -jnp.inf, scores)
        return (jax.nn.log_softmax(scores, axis=-1) if training
                else jax.nn.softmax(scores, axis=-1))

    # Training mode (module default): log_softmax over the sequence dim.
    attn.training = True
    out_train = jax.block_until_ready(attn(x, y, x_mask))
    ref_train = ref_forward(True)
    assert out_train.shape == (batch, seq_len)
    assert out_train.dtype == jnp.float32
    assert np.allclose(np.asarray(out_train), np.asarray(ref_train),
                       rtol=1e-5, atol=1e-5)

    # Eval mode: softmax over the sequence dim.
    attn.training = False
    out_eval = jax.block_until_ready(attn(x, y, x_mask))
    ref_eval = ref_forward(False)
    assert np.allclose(np.asarray(out_eval), np.asarray(ref_eval),
                       rtol=1e-5, atol=1e-5)
    assert np.allclose(np.asarray(out_eval).sum(axis=-1), 1.0, rtol=1e-5)

    print("KERNEL_OK")
</pallas_src>

<mosaic_0001>
module attributes {stable_mosaic.version = 11 : i64} {
  func.func @kernel(%arg0: i32, %arg1: memref<2x8x32xf32, #tpu.memory_space<vmem>>, %arg2: memref<2x16xf32, #tpu.memory_space<vmem>>, %arg3: memref<32x16xf32, #tpu.memory_space<vmem>>, %arg4: memref<1x32xf32, #tpu.memory_space<vmem>>, %arg5: memref<2x8xi32, #tpu.memory_space<vmem>>, %arg6: memref<2x8xf32, #tpu.memory_space<vmem>>) attributes {dimension_semantics = [#tpu.dimension_semantics<parallel>], iteration_bounds = array<i64: 1>, scalar_prefetch = 0 : i64, scratch_operands = 0 : i64, tpu.core_type = #tpu.core_type<tc>, window_params = [{transform_indices = @transform_0, window_bounds = array<i64: 2, 8, 32>}, {transform_indices = @transform_1, window_bounds = array<i64: 2, 16>}, {pipeline_mode = #tpu.pipeline_mode<synchronous>, transform_indices = @transform_2, window_bounds = array<i64: 32, 16>}, {pipeline_mode = #tpu.pipeline_mode<synchronous>, transform_indices = @transform_3, window_bounds = array<i64: 1, 32>}, {transform_indices = @transform_4, window_bounds = array<i64: 2, 8>}, {transform_indices = @transform_5, window_bounds = array<i64: 2, 8>}]} {
    %c0 = arith.constant 0 : index
    %c0_0 = arith.constant 0 : index
    %0 = vector.load %arg2[%c0, %c0_0] : memref<2x16xf32, #tpu.memory_space<vmem>>, vector<2x16xf32>
    %c0_1 = arith.constant 0 : index
    %c0_2 = arith.constant 0 : index
    %1 = vector.load %arg3[%c0_1, %c0_2] : memref<32x16xf32, #tpu.memory_space<vmem>>, vector<32x16xf32>
    %cst = arith.constant dense<0.000000e+00> : vector<2x32xf32>
    %2 = tpu.matmul %0, %1, %cst {dimension_numbers = #tpu.dot_dimension_numbers<[1], [1], [0], [0], [0, 0, 1, 0], [], []>} : vector<2x16xf32>, vector<32x16xf32>, vector<2x32xf32> -> vector<2x32xf32>
    %c0_3 = arith.constant 0 : index
    %c0_4 = arith.constant 0 : index
    %3 = vector.load %arg4[%c0_3, %c0_4] : memref<1x32xf32, #tpu.memory_space<vmem>>, vector<1x32xf32>
    %4 = vector.broadcast %3 : vector<1x32xf32> to vector<2x32xf32>
    %5 = arith.addf %2, %4 : vector<2x32xf32>
    %c0_5 = arith.constant 0 : index
    %c0_6 = arith.constant 0 : index
    %c0_7 = arith.constant 0 : index
    %6 = vector.load %arg1[%c0_5, %c0_6, %c0_7] : memref<2x8x32xf32, #tpu.memory_space<vmem>>, vector<2x8x32xf32>
    %c0_8 = arith.constant 0 : index
    %c0_9 = arith.constant 0 : index
    %7 = vector.load %arg5[%c0_8, %c0_9] : memref<2x8xi32, #tpu.memory_space<vmem>>, vector<2x8xi32>
    %8 = vector.shape_cast %5 : vector<2x32xf32> to vector<2x1x32xf32>
    %9 = vector.broadcast %8 : vector<2x1x32xf32> to vector<2x8x32xf32>
    %10 = arith.mulf %6, %9 : vector<2x8x32xf32>
    %cst_10 = arith.constant dense<0.000000e+00> : vector<2x8xf32>
    %11 = vector.multi_reduction <add>, %10, %cst_10 [2] : vector<2x8x32xf32> to vector<2x8xf32>
    %c0_i32 = arith.constant 0 : i32
    %12 = vector.broadcast %c0_i32 : i32 to vector<2x8xi32>
    %13 = arith.cmpi ne, %7, %12 : vector<2x8xi32>
    %cst_11 = arith.constant 0xFF800000 : f32
    %14 = vector.broadcast %cst_11 : f32 to vector<2x8xf32>
    %15 = arith.select %13, %14, %11 : vector<2x8xi1>, vector<2x8xf32>
    %cst_12 = arith.constant dense<0xFF800000> : vector<2xf32>
    %16 = vector.multi_reduction <maximumf>, %15, %cst_12 [1] : vector<2x8xf32> to vector<2xf32>
    %17 = vector.shape_cast %16 : vector<2xf32> to vector<2x1xf32>
    %18 = vector.broadcast %17 : vector<2x1xf32> to vector<2x8xf32>
    %19 = arith.subf %15, %18 : vector<2x8xf32>
    %20 = math.exp %19 : vector<2x8xf32>
    %cst_13 = arith.constant dense<0.000000e+00> : vector<2xf32>
    %21 = vector.multi_reduction <add>, %20, %cst_13 [1] : vector<2x8xf32> to vector<2xf32>
    %22 = vector.shape_cast %21 : vector<2xf32> to vector<2x1xf32>
    %23 = math.log %22 : vector<2x1xf32>
    %24 = vector.broadcast %23 : vector<2x1xf32> to vector<2x8xf32>
    %25 = arith.subf %19, %24 : vector<2x8xf32>
    %c0_14 = arith.constant 0 : index
    %c0_15 = arith.constant 0 : index
    %26 = vector.load %arg6[%c0_14, %c0_15] : memref<2x8xf32, #tpu.memory_space<vmem>>, vector<2x8xf32>
    tpu.vector_store %arg6[%c0_14, %c0_15], %25 {strides = array<i32>} : memref<2x8xf32, #tpu.memory_space<vmem>>, vector<2x8xf32>,
    return
  }
  func.func @transform_0(%arg0: i32) -> (i32, i32, i32) {
    %c0_i32 = arith.constant 0 : i32
    %c0_i32_0 = arith.constant 0 : i32
    %c0_i32_1 = arith.constant 0 : i32
    return %arg0, %c0_i32, %c0_i32_0 : i32, i32, i32
  }
  func.func @transform_1(%arg0: i32) -> (i32, i32) {
    %c0_i32 = arith.constant 0 : i32
    %c0_i32_0 = arith.constant 0 : i32
    return %arg0, %c0_i32 : i32, i32
  }
  func.func @transform_2(%arg0: i32) -> (i32, i32) {
    %c0_i32 = arith.constant 0 : i32
    %c0_i32_0 = arith.constant 0 : i32
    %c0_i32_1 = arith.constant 0 : i32
    return %c0_i32, %c0_i32_0 : i32, i32
  }
  func.func @transform_3(%arg0: i32) -> (i32, i32) {
    %c0_i32 = arith.constant 0 : i32
    %c0_i32_0 = arith.constant 0 : i32
    %c0_i32_1 = arith.constant 0 : i32
    return %c0_i32, %c0_i32_0 : i32, i32
  }
  func.func @transform_4(%arg0: i32) -> (i32, i32) {
    %c0_i32 = arith.constant 0 : i32
    %c0_i32_0 = arith.constant 0 : i32
    return %arg0, %c0_i32 : i32, i32
  }
  func.func @transform_5(%arg0: i32) -> (i32, i32) {
    %c0_i32 = arith.constant 0 : i32
    %c0_i32_0 = arith.constant 0 : i32
    return %arg0, %c0_i32 : i32, i32
  }
}

</mosaic_0001>

<llo_original>
// kernel: tpu_custom_call.1
$region0: #{tpu_custom_call.1}
  #allocation0 [shape = 'u32[]', space=smem, size = 0x4, offset = 0x4, fixed_abs, tag = 'smem constant byte address 0x4 - core index']
  #allocation1 [shape = 'u32[144,128]{1,0:T(1,128)}', space=vmem, size = 0x12000, scoped, tag = 'internal scratch']
  %s0 = inlined_call_operand.vmem [shape: f32[2,8,32], index: 0, kind: input, shape index: {}]
  %s1 = inlined_call_operand.vmem [shape: f32[2,16], index: 1, kind: input, shape index: {}]
  %s2 = inlined_call_operand.vmem [shape: f32[32,16], index: 2, kind: input, shape index: {}]
  %s3 = inlined_call_operand.vmem [shape: f32[1,32], index: 3, kind: input, shape index: {}]
  %s4 = inlined_call_operand.vmem [shape: s32[2,8], index: 4, kind: input, shape index: {}]
  %s5 = inlined_call_operand.hbm [shape: f32[2,8], index: 5, kind: output, shape index: {}]
  %s6 = sld [smem:[#allocation0]]
  $region30: #{tpu_custom_call.1} parent=0
    _
  %s8 = ssub.s32 1, %s6
  %s9 = scalar_select 0, %s8, %s6
  $region1: #{tpu_custom_call.1} parent=0
    #allocation2 [shape = 'u8[1024]{0}', space=vmem, size = 0x400, scoped, tag = 'output window, operand 0, single buffered']
    #allocation3 [shape = 's32[1]{0}', space=sflag, size = 0x4, scoped, tag = 'scoped memory for tpu_custom_call.1']
    %10 = vsyncpa [#allocation3], 0
    // Predicated region
    $region2: #{tpu_custom_call.1} parent=1 // pred_check
      _
    $region3: #{tpu_custom_call.1} parent=1 // pred_check_branch
      %12 = sbr.rel (0) target = $region5
    $region4: #{tpu_custom_call.1} parent=1 // pred_region
      _
    $region5: #{tpu_custom_call.1} parent=1 // pred_fallthru
      _
    // Predicated region
    $region6: #{tpu_custom_call.1} parent=1 // pred_check
      _
    $region7: #{tpu_custom_call.1} parent=1 // pred_check_branch
      %14 = sbr.rel (0) target = $region9
    $region8: #{tpu_custom_call.1} parent=1 // pred_region
      _
    $region9: #{tpu_custom_call.1} parent=1 // pred_fallthru
      _
    // Predicated region
    $region10: #{tpu_custom_call.1} parent=1 // pred_check
      _
    $region11: #{tpu_custom_call.1} parent=1 // pred_check_branch
      %16 = sbr.rel (0) target = $region13
    $region12: #{tpu_custom_call.1} parent=1 // pred_region
      _
    $region13: #{tpu_custom_call.1} parent=1 // pred_fallthru
      _
    // Predicated region
    $region14: #{tpu_custom_call.1} parent=1 // pred_check
      _
    $region15: #{tpu_custom_call.1} parent=1 // pred_check_branch
      %18 = sbr.rel (0) target = $region17
    $region16: #{tpu_custom_call.1} parent=1 // pred_region
      _
    $region17: #{tpu_custom_call.1} parent=1 // pred_fallthru
      _
    // Predicated region
    $region18: #{tpu_custom_call.1} parent=1 // pred_check
      _
    $region19: #{tpu_custom_call.1} parent=1 // pred_check_branch
      %20 = sbr.rel (0) target = $region21
    $region20: #{tpu_custom_call.1} parent=1 // pred_region
      _
    $region21: #{tpu_custom_call.1} parent=1 // pred_fallthru
      _
    %v21 = vld [vmem:[%s1] sm:$0x3]
    %v22 = vld [vmem:[%s2] sm:$0xff]
    %v23 = vld [vmem:[%s2 + $0x8] sm:$0xff]
    %v24 = vld [vmem:[%s2 + $0x10] sm:$0xff]
    %v25 = vld [vmem:[%s2 + $0x18] sm:$0xff]
    %v26 = vld [vmem:[%s3] sm:$0x1]
    %v28 = vlaneseq
    %v29 = vshrl.u32 %v28, 7
    %v30 = vsub.s32 0, %v29
    %v31 = vrot.slane %v26, %v30
    %vm33 = vcmask 130048
    %v35 = vsel %vm33, %v21, 0
    %v38 = vsel %vm33, %v22, 0
    %v41 = vsel %vm33, %v23, 0
    %v44 = vsel %vm33, %v24, 0
    %v47 = vsel %vm33, %v25, 0
    %49 = vmatprep.subr.mxu0 0.0
    %50 = vmatpush1.xpose.msra.mxu0 %v38
    %51 = vmatprep.subr.mxu0 0.0
    %52 = vmatpush1.xpose.msra.mxu0 %v41
    %53 = vmatprep.subr.mxu0 0.0
    %54 = vmatpush1.xpose.msra.mxu0 %v44
    %55 = vmatprep.subr.mxu0 0.0
    %56 = vmatpush1.xpose.msra.mxu0 %v47
    %57 = vmatprep.subr.mxu0 0.0
    %58 = vmatpush1.xpose.msra.mxu0 0.0
    %59 = vmatprep.subr.mxu0 0.0
    %60 = vmatpush1.xpose.msra.mxu0 0.0
    %61 = vmatprep.subr.mxu0 0.0
    %62 = vmatpush1.xpose.msra.mxu0 0.0
    %63 = vmatprep.subr.mxu0 0.0
    %64 = vmatpush1.xpose.msra.mxu0 0.0
    %65 = vmatprep.subr.mxu0 0.0
    %66 = vmatpush1.xpose.msra.mxu0 0.0
    %67 = vmatprep.subr.mxu0 0.0
    %68 = vmatpush1.xpose.msra.mxu0 0.0
    %69 = vmatprep.subr.mxu0 0.0
    %70 = vmatpush1.xpose.msra.mxu0 0.0
    %71 = vmatprep.subr.mxu0 0.0
    %72 = vmatpush1.xpose.msra.mxu0 0.0
    %73 = vmatprep.subr.mxu0 0.0
    %74 = vmatpush1.xpose.msra.mxu0 0.0
    %75 = vmatprep.subr.mxu0 0.0
    %76 = vmatpush1.xpose.msra.mxu0 0.0
    %77 = vmatprep.subr.mxu0 0.0
    %78 = vmatpush1.xpose.msra.mxu0 0.0
    %79 = vmatprep.subr.mxu0 0.0
    %80 = vmatpush1.xpose.msra.mxu0 0.0
    %81 = vmatprep.subr.mxu0 0.0
    %82 = vmatpush1.xpose.msra.mxu0 0.0
    %83 = vmatprep.subr.mxu0 0.0
    %84 = vmatpush1.xpose.msra.mxu0 0.0
    %85 = vmatprep.subr.mxu0 0.0
    %86 = vmatpush1.xpose.msra.mxu0 0.0
    %87 = vmatprep.subr.mxu0 0.0
    %88 = vmatpush1.xpose.msra.mxu0 0.0
    %89 = vmatprep.subr.mxu0 0.0
    %90 = vmatpush1.xpose.msra.mxu0 0.0
    %91 = vmatprep.subr.mxu0 0.0
    %92 = vmatpush1.xpose.msra.mxu0 0.0
    %93 = vmatprep.subr.mxu0 0.0
    %94 = vmatpush1.xpose.msra.mxu0 0.0
    %95 = vmatprep.subr.mxu0 0.0
    %96 = vmatpush1.xpose.msra.mxu0 0.0
    %97 = vmatprep.subr.mxu0 0.0
    %98 = vmatpush1.xpose.msra.mxu0 0.0
    %99 = vmatprep.subr.mxu0 0.0
    %100 = vmatpush1.xpose.msra.mxu0 0.0
    %101 = vmatprep.subr.mxu0 0.0
    %102 = vmatpush1.xpose.msra.mxu0 0.0
    %103 = vmatprep.subr.mxu0 0.0
    %104 = vmatpush1.xpose.msra.mxu0 0.0
    %105 = vmatprep.subr.mxu0 0.0
    %106 = vmatpush1.xpose.msra.mxu0 0.0
    %107 = vmatprep.subr.mxu0 0.0
    %108 = vmatpush1.xpose.msra.mxu0 0.0
    %109 = vmatprep.subr.mxu0 0.0
    %110 = vmatpush1.xpose.msra.mxu0 0.0
    %111 = vmatprep.subr.mxu0 0.0
    %112 = vmatpush1.xpose.msra.mxu0 0.0
    %113 = vmatprep.mubr.f32.mxu0 0.0
    %114 = vmatmul.mubr.f32.gmra.mrb[0].mxu0 %v35
    %v115 = vpop.f32.mrb[0].mxu0
    %v116 = vadd.f32 %v31, %v115
    %v117 = vpop.f32.mrb[0].mxu0
    %118 = vdwg.mxu0
    %v119 = vld [vmem:[%s0] sm:$0xff]
    %v120 = vld [vmem:[%s0 + $0x8] sm:$0xff]
    %v121 = vld [vmem:[%s4] sm:$0x3]
    %v124 = vunpack.c.l.s4 1966171168
    %v125 = vunpack.c.0.s8 %v124
    %v126 = vlaneseq
    %v127 = vshrl.u32 %v126, 7
    %v128 = vsub.s32 %v125, %v127
    %v129 = vrot.slane %v116, %v128
    %v130 = vcombine.high %v129, %v129
    %v132 = vunpack.c.l.s4 1966171168
    %v133 = vunpack.c.0.s8 %v132
    %v134 = vlaneseq
    %v135 = vshrl.u32 %v134, 7
    %v136 = vsub.s32 %v133, %v135
    %v137 = vrot.slane %v129, %v136
    %v139 = vunpack.c.l.s4 1966171168
    %v140 = vunpack.c.0.s8 %v139
    %v141 = vlaneseq
    %v142 = vshrl.u32 %v141, 7
    %v143 = vsub.s32 %v140, %v142
    %v144 = vrot.slane %v130, %v143
    %v145 = vlaneseq
    %v146 = vshrl.u32 %v145, 7
    %v147 = vsub.s32 0, %v146
    %v148 = vrot.slane %v137, %v147
    %v149 = vlaneseq
    %v150 = vshrl.u32 %v149, 7
    %v151 = vsub.s32 0, %v150
    %v152 = vrot.slane %v144, %v151
    %v155 = vmul.f32 %v119, %v148
    %v156 = vmul.f32 %v120, %v152
    %vm157 = vcmask 261120
    %v158 = vsel %vm157, %v155, 0.0
    %159 = vadd.xlane.f32.xlu0 %v158
    %v160 = vpop.xlane.xlu0 %159
    %v161 = vsel %vm157, %v156, 0.0
    %162 = vadd.xlane.f32.xlu0 %v161
    %v163 = vpop.xlane.xlu0 %162
    %vm164 = vcmp.ne.s32.totalorder %v121, 0
    %v167 = vlaneseq
    %v168 = vand.u32 %v167, 127
    %v169 = vlaneseq
    %v170 = vshrl.u32 %v169, 7
    %v171 = vsub.s32 %v168, %v170
    %v172 = vrot.slane %v160, %v171
    %v173 = vlaneseq
    %v174 = vshrl.u32 %v173, 7
    %v175 = vsub.s32 %v168, %v174
    %v176 = vrot.slane %v163, %v175
    %vm177 = vcmask 1041409
    %v178 = vsel %vm177, %v176, %v172
    %v180 = vsel %vm164, -inf, %v178
    %vm181 = vcmask 58368
    %v182 = vsel %vm181, %v180, -inf
    %183 = vmax.xlane.f32.xlu0 %v182
    %v184 = vpop.xlane.xlu0 %183
    %v185 = vsub.f32 %v180, %v184
    %v186 = vmul.f32 %v185, 1.442695
    %v187 = vpow.pop %v186
    %v188 = vsel %vm181, %v187, 0.0
    %189 = vadd.xlane.f32.xlu0 %v188
    %v190 = vpop.xlane.xlu0 %189
    %v191 = vlog2.pop %v190
    %v192 = vmul.f32 %v191, 0.6931472
    %v193 = vsub.f32 %v185, %v192
    %194 = vst.msk [vmem:[#allocation2] sm:$0x3] %vm181, %v193
    // Predicated region
    $region22: #{tpu_custom_call.1} parent=1 // pred_check
      _
    $region23: #{tpu_custom_call.1} parent=1 // pred_check_branch
      %196 = sbr.rel (0) target = $region25
    $region24: #{tpu_custom_call.1} parent=1 // pred_region
      %s198 = ssub.s32 32, 32
      %199 = vsyncadd [#allocation3], %s198
      %s201 = sshll.u32 [#allocation2], 4
      %s202 = int_to_ptr.vmem [resolvable:$true] %s201
      %204 = dma.vmem_to_hbm [thread:$0]  %s202, 32, %s5, [#allocation3]
    $region25: #{tpu_custom_call.1} parent=1 // pred_fallthru
      _
    // Predicated region
    $region26: #{tpu_custom_call.1} parent=1 // pred_check
      _
    $region27: #{tpu_custom_call.1} parent=1 // pred_check_branch
      %206 = sbr.rel (0) target = $region29
    $region28: #{tpu_custom_call.1} parent=1 // pred_region
      %207 = dma.done [#allocation3], 32
    $region29: #{tpu_custom_call.1} parent=1 // pred_fallthru
      _
    %208 = vsyncpa [#allocation3], 1

</llo_original>
